<compile_context>
chip_gen: v6e
topology: v6e:2x2x1
jax: 0.10.0
libtpu: 0.0.40
codegen_flags: <defaults>
</compile_context>

<pallas_src>
import jax
import jax.numpy as jnp
from jax.experimental import pallas as pl
from jax.experimental.pallas import tpu as pltpu


def _round_up(v, m):
    return ((v + m - 1) // m) * m


def _chip_budgets():
    """Per-generation sizing; VMEM capacity is used as the chip proxy."""
    vmem_cap = 64 << 20                       # conservative default (v7x-like)
    try:
        vmem_cap = int(pltpu.get_tpu_info().vmem_capacity_bytes)
    except Exception:
        pass
    if vmem_cap >= (96 << 20):                # v5e / v6e: 128 MiB VMEM
        fused_max = 24 << 20                  # fused uses ~4x block (in+out dbl-buffered)
        chunk_target = 4 << 20                # >= 4 MiB amortizes ~0.35 us/step overhead
        vmem_limit_cap = 110 << 20
    else:                                     # v7x: 64 MiB VMEM (or unknown)
        fused_max = 10 << 20                  # 4*10 MiB + 8 MiB = 48 MiB <= cap below
        chunk_target = 4 << 20                # ~1.3 us DMA at 3.2 TB/s vs 0.35 us/step
        vmem_limit_cap = 48 << 20             # leave >= 16 MiB headroom on 64 MiB VMEM
    return vmem_cap, fused_max, chunk_target, vmem_limit_cap


# ---------------------------------------------------------------------------
# Fused single-pass kernel: one batch image per grid step.
# ---------------------------------------------------------------------------
def _fused_kernel(x_ref, w_ref, b_ref, o_ref):
    # x_ref / o_ref: (1, C, HW) VMEM   w_ref: (1, C, 1) VMEM (= fc weight / (H*W))
    # b_ref: (1, 1) SMEM bias
    x = x_ref[...].astype(jnp.float32)
    ch = jnp.sum(x, axis=-1, keepdims=True)            # (1, C, 1) per-channel sums
    s = jnp.sum(ch * w_ref[...]) + b_ref[0, 0]         # fc (1x1 conv) scalar
    s = jnp.maximum(s, jnp.float32(0.0))               # ReLU
    # Re-read x_ref for the writeback (cheap VMEM reload instead of keeping the
    # whole tile live in vregs across the reduce -> multiply phases).
    o_ref[...] = (x_ref[...] * s).astype(o_ref.dtype)


# ---------------------------------------------------------------------------
# Two-pass path for images that do not fit the fused budget.
# ---------------------------------------------------------------------------
def _reduce_kernel(x_ref, w_ref, b_ref, s_ref, acc_ref):
    # x_ref: (1, C, TH)  w_ref: (1, C, 1) VMEM  b_ref: (1, 1) SMEM
    # s_ref: (1, 1, 128) output (per-batch scale, replicated over lanes)
    # acc_ref: (1, C, 1) f32 scratch (unweighted per-channel partial sums)
    k = pl.program_id(1)

    @pl.when(k == 0)
    def _():
        acc_ref[...] = jnp.zeros_like(acc_ref)

    # Hot loop: unweighted per-channel lane-axis sums only (vreg-wise VPU
    # accumulation with one small cross-lane tail). No weight multiply and no
    # scalar broadcast per chunk.
    acc_ref[...] += jnp.sum(x_ref[...].astype(jnp.float32), axis=-1, keepdims=True)

    @pl.when(k == pl.num_programs(1) - 1)
    def _():
        s = jnp.sum(acc_ref[...] * w_ref[...]) + b_ref[0, 0]
        s = jnp.maximum(s, jnp.float32(0.0))
        s_ref[...] = jnp.broadcast_to(s, s_ref.shape)


def _scale_kernel(s_ref, x_ref, o_ref):
    # s_ref: (B, 128) f32 SMEM   x_ref / o_ref: (1, T1, T2)
    bi = pl.program_id(0)
    o_ref[...] = (x_ref[...] * s_ref[bi, 0]).astype(o_ref.dtype)


def _pick_chunk(hw_p, c_pad, itemsize, target_bytes):
    """Largest TH (multiple of 128 dividing hw_p) with c_pad*TH*itemsize <= target.

    Falls back to a single 128-lane stripe when even that exceeds the target.
    """
    units = hw_p // 128
    best = 1
    for d in range(1, units + 1):
        if units % d == 0 and c_pad * d * 128 * itemsize <= target_bytes:
            best = d
    return best * 128


def _fused_call(x3, w3, b2, vmem_limit_cap, tile_bytes):
    B, C, HW = x3.shape
    itemsize = jnp.dtype(x3.dtype).itemsize
    vmem_limit = int(min(vmem_limit_cap, max(32 << 20, 4 * tile_bytes + (8 << 20))))
    return pl.pallas_call(
        _fused_kernel,
        out_shape=jax.ShapeDtypeStruct((B, C, HW), x3.dtype),
        grid_spec=pltpu.PrefetchScalarGridSpec(
            num_scalar_prefetch=0,
            grid=(B,),
            in_specs=[
                pl.BlockSpec((1, C, HW), lambda bi: (bi, 0, 0)),
                pl.BlockSpec((1, C, 1), lambda bi: (0, 0, 0)),
                pl.BlockSpec(memory_space=pltpu.MemorySpace.SMEM),
            ],
            out_specs=pl.BlockSpec((1, C, HW), lambda bi: (bi, 0, 0)),
        ),
        compiler_params=pltpu.CompilerParams(
            dimension_semantics=("parallel",),
            vmem_limit_bytes=vmem_limit,
        ),
        cost_estimate=pl.CostEstimate(
            flops=3 * B * C * HW,
            transcendentals=0,
            bytes_accessed=2 * B * C * HW * itemsize,
        ),
    )(x3, w3, b2)


def _reduce_call(x_r, w3, b2, th, vmem_limit_cap, chunk_tile_bytes):
    B, C, HWp = x_r.shape
    itemsize = jnp.dtype(x_r.dtype).itemsize
    n_chunks = HWp // th
    vmem_limit = int(min(vmem_limit_cap,
                         max(32 << 20, 2 * chunk_tile_bytes + (4 << 20))))
    return pl.pallas_call(
        _reduce_kernel,
        out_shape=jax.ShapeDtypeStruct((B, 1, 128), jnp.float32),
        grid_spec=pltpu.PrefetchScalarGridSpec(
            num_scalar_prefetch=0,
            grid=(B, n_chunks),
            in_specs=[
                pl.BlockSpec((1, C, th), lambda bi, k: (bi, 0, k)),
                pl.BlockSpec((1, C, 1), lambda bi, k: (0, 0, 0)),
                pl.BlockSpec(memory_space=pltpu.MemorySpace.SMEM),
            ],
            out_specs=pl.BlockSpec((1, 1, 128), lambda bi, k: (bi, 0, 0)),
            scratch_shapes=[pltpu.VMEM((1, C, 1), jnp.float32)],
        ),
        compiler_params=pltpu.CompilerParams(
            dimension_semantics=("parallel", "arbitrary"),
            vmem_limit_bytes=vmem_limit,
        ),
        cost_estimate=pl.CostEstimate(
            flops=B * C * HWp,
            transcendentals=0,
            bytes_accessed=B * C * HWp * itemsize,
        ),
    )(x_r, w3, b2)


def _scale_call(s2, x_v, t1, t2, chunk_axis, grid_inner, vmem_limit_cap):
    # x_v: (B, D1, D2); the inner block is (1, t1, t2); chunk_axis selects which
    # of the last two dims the inner grid axis walks.
    B, D1, D2 = x_v.shape
    itemsize = jnp.dtype(x_v.dtype).itemsize
    block_bytes = t1 * t2 * itemsize
    vmem_limit = int(min(vmem_limit_cap, max(32 << 20, 4 * block_bytes + (4 << 20))))
    if chunk_axis == 1:
        imap = lambda bi, k: (bi, k, 0)
    else:
        imap = lambda bi, k: (bi, 0, k)
    return pl.pallas_call(
        _scale_kernel,
        out_shape=jax.ShapeDtypeStruct(x_v.shape, x_v.dtype),
        grid_spec=pltpu.PrefetchScalarGridSpec(
            num_scalar_prefetch=0,
            grid=(B, grid_inner),
            in_specs=[
                pl.BlockSpec(memory_space=pltpu.MemorySpace.SMEM),
                pl.BlockSpec((1, t1, t2), imap),
            ],
            out_specs=pl.BlockSpec((1, t1, t2), imap),
        ),
        compiler_params=pltpu.CompilerParams(
            dimension_semantics=("parallel", "parallel"),
            vmem_limit_bytes=vmem_limit,
        ),
        cost_estimate=pl.CostEstimate(
            flops=B * D1 * D2,
            transcendentals=0,
            bytes_accessed=2 * B * D1 * D2 * itemsize,
        ),
    )(s2, x_v)


def tongdao_forward(x, w, b, *, force_two_pass=False):
    """x: (B, C, H, W); w: (C,) = Conv2d(C, 1, 1, bias=True) weight; b: () its bias."""
    B, C, H, W = x.shape
    HW = H * W
    N = C * HW
    itemsize = jnp.dtype(x.dtype).itemsize
    sub = max(1, 32 // (8 * itemsize)) * 8          # sublane multiple: 8 f32 / 16 bf16
    c_pad = _round_up(C, sub)
    hw_p = _round_up(HW, 128)

    vmem_cap, fused_max, chunk_target, vmem_limit_cap = _chip_budgets()

    # Fold the 1/(H*W) of the global average pool into the fc weight; bias -> SMEM.
    w3 = (w.astype(jnp.float32) / jnp.float32(HW)).reshape(1, C, 1)
    b2 = jnp.reshape(b, (1, 1)).astype(jnp.float32)

    x3 = x.reshape(B, C, HW)                        # free contiguous reshape

    # Fused whole-image path (2x HBM traffic) when one padded VMEM tile fits the
    # per-chip budget; otherwise two passes (3x traffic) with ~4 MiB chunks.
    tile_bytes = c_pad * hw_p * itemsize
    use_fused = (tile_bytes <= fused_max) and not force_two_pass

    # v7x megacore: with B == 1 the fused grid=(1,) keeps only one of the two
    # TensorCores busy; pass B of the two-pass path parallelizes over chunks.
    if use_fused and B == 1 and vmem_cap < (96 << 20) and tile_bytes > (2 << 20):
        use_fused = False

    if use_fused:
        out3 = _fused_call(x3, w3, b2, vmem_limit_cap, tile_bytes)
        return out3.reshape(B, C, H, W)

    # ---- Pass A: chunked unweighted reduction -> per-batch ReLU'd scale -------
    if hw_p != HW:
        # TODO(synk): zero-padding H*W to a 128 multiple costs one extra copy of
        # x; an in-kernel lane mask on the last chunk would avoid it.
        x_r = jnp.pad(x3, ((0, 0), (0, 0), (0, hw_p - HW)))
    else:
        x_r = x3
    th = _pick_chunk(hw_p, c_pad, itemsize, chunk_target)
    chunk_tile_bytes = c_pad * th * itemsize
    # TODO(synk): extremely large C (single (C,128) stripe > chunk budget) would
    # need tiling over the channel axis as well; not implemented.
    s3 = _reduce_call(x_r, w3, b2, th, vmem_limit_cap, chunk_tile_bytes)
    s2 = s3.reshape(B, 128)                         # free reshape; feeds SMEM below

    # ---- Pass B: streaming scale on a sublane/lane-dense view of x ------------
    if N % 128 == 0:
        nr = N // 128
        x_v = x.reshape(B, nr, 128)                 # fully dense (free reshape)
        rows_budget = max(8, (chunk_target // (128 * itemsize)) // 8 * 8)
        tr = nr if nr <= rows_budget else rows_budget
        out_v = _scale_call(s2, x_v, tr, 128, 1, pl.cdiv(nr, tr), vmem_limit_cap)
    else:
        # TODO(synk): C*H*W not a multiple of 128 -> keep the (B, C, HW) view
        # (ragged lane blocks; masked stores only on the edge block).
        x_v = x3
        lane_budget = max(128, (chunk_target // (c_pad * itemsize)) // 128 * 128)
        tw = HW if HW <= lane_budget else lane_budget
        out_v = _scale_call(s2, x_v, C, tw, 2, pl.cdiv(HW, tw), vmem_limit_cap)
    return out_v.reshape(B, C, H, W)


def tongdao_reference(x, w, b):
    """Pure-JAX reference mirroring the PyTorch forward."""
    mean_c = jnp.mean(x.astype(jnp.float32), axis=(2, 3))               # (B, C)
    y = jnp.sum(mean_c * w.astype(jnp.float32)[None, :], axis=1) + b    # (B,)
    y = jnp.maximum(y, 0.0)                                             # ReLU
    return (x.astype(jnp.float32) * y[:, None, None, None]).astype(x.dtype)


if __name__ == "__main__":
    key = jax.random.PRNGKey(0)
    kx, kw, kb = jax.random.split(key, 3)

    B, C, H, W = 2, 4, 16, 16
    x = jax.random.normal(kx, (B, C, H, W), dtype=jnp.float32)
    w = jax.random.normal(kw, (C,), dtype=jnp.float32) * 0.1
    b = jax.random.normal(kb, (), dtype=jnp.float32) * 0.1

    ref = tongdao_reference(x, w, b)

    # Fused (default) path.
    out_fused = jax.block_until_ready(tongdao_forward(x, w, b))
    assert out_fused.shape == (B, C, H, W)
    assert jnp.allclose(out_fused, ref, atol=1e-5, rtol=1e-5), "fused path mismatch"

    # Two-pass path (reduce kernel + dense streaming scale), forced for coverage.
    out_2p = jax.block_until_ready(tongdao_forward(x, w, b, force_two_pass=True))
    assert jnp.allclose(out_2p, ref, atol=1e-5, rtol=1e-5), "two-pass path mismatch"

    print("KERNEL_OK")
</pallas_src>

<mosaic_0001>
module attributes {stable_mosaic.version = 11 : i64} {
  func.func @_fused_kernel(%arg0: i32, %arg1: memref<1x4x256xf32, #tpu.memory_space<vmem>>, %arg2: memref<1x4x1xf32, #tpu.memory_space<vmem>>, %arg3: memref<1x1xf32, #tpu.memory_space<smem>>, %arg4: memref<1x4x256xf32, #tpu.memory_space<vmem>>) attributes {dimension_semantics = [#tpu.dimension_semantics<parallel>], iteration_bounds = array<i64: 2>, scalar_prefetch = 0 : i64, scratch_operands = 0 : i64, tpu.core_type = #tpu.core_type<tc>, window_params = [{transform_indices = @transform_0, window_bounds = array<i64: 1, 4, 256>}, {pipeline_mode = #tpu.pipeline_mode<synchronous>, transform_indices = @transform_1, window_bounds = array<i64: 1, 4, 1>}, {transform_indices = @transform_2, window_bounds = array<i64: 1, 1>}, {transform_indices = @transform_3, window_bounds = array<i64: 1, 4, 256>}]} {
    %c0 = arith.constant 0 : index
    %c0_0 = arith.constant 0 : index
    %c0_1 = arith.constant 0 : index
    %0 = vector.load %arg1[%c0, %c0_0, %c0_1] : memref<1x4x256xf32, #tpu.memory_space<vmem>>, vector<1x4x256xf32>
    %cst = arith.constant dense<0.000000e+00> : vector<1x4xf32>
    %1 = vector.multi_reduction <add>, %0, %cst [2] : vector<1x4x256xf32> to vector<1x4xf32>
    %2 = vector.shape_cast %1 : vector<1x4xf32> to vector<1x4x1xf32>
    %c0_2 = arith.constant 0 : index
    %c0_3 = arith.constant 0 : index
    %c0_4 = arith.constant 0 : index
    %3 = vector.load %arg2[%c0_2, %c0_3, %c0_4] : memref<1x4x1xf32, #tpu.memory_space<vmem>>, vector<1x4x1xf32>
    %4 = arith.mulf %2, %3 : vector<1x4x1xf32>
    %5 = vector.shape_cast %4 : vector<1x4x1xf32> to vector<1x1x4x1xf32>
    %cst_5 = arith.constant dense<0.000000e+00> : vector<1xf32>
    %6 = vector.multi_reduction <add>, %5, %cst_5 [1, 2, 3] : vector<1x1x4x1xf32> to vector<1xf32>
    %7 = vector.shape_cast %6 : vector<1xf32> to vector<1x1x1x1xf32>
    %8 = vector.extract %7[0, 0, 0, 0] : f32 from vector<1x1x1x1xf32>
    %c0_6 = arith.constant 0 : index
    %c0_7 = arith.constant 0 : index
    %9 = memref.load %arg3[%c0_6, %c0_7] : memref<1x1xf32, #tpu.memory_space<smem>>
    %10 = arith.addf %8, %9 : f32
    %cst_8 = arith.constant 0.000000e+00 : f32
    %11 = arith.maximumf %10, %cst_8 : f32
    %c0_9 = arith.constant 0 : index
    %c0_10 = arith.constant 0 : index
    %c0_11 = arith.constant 0 : index
    %12 = vector.load %arg1[%c0_9, %c0_10, %c0_11] : memref<1x4x256xf32, #tpu.memory_space<vmem>>, vector<1x4x256xf32>
    %13 = vector.broadcast %11 : f32 to vector<1x4x256xf32>
    %14 = arith.mulf %12, %13 : vector<1x4x256xf32>
    %c0_12 = arith.constant 0 : index
    %c0_13 = arith.constant 0 : index
    %c0_14 = arith.constant 0 : index
    %15 = vector.load %arg4[%c0_12, %c0_13, %c0_14] : memref<1x4x256xf32, #tpu.memory_space<vmem>>, vector<1x4x256xf32>
    tpu.vector_store %arg4[%c0_12, %c0_13, %c0_14], %14 {strides = array<i32>} : memref<1x4x256xf32, #tpu.memory_space<vmem>>, vector<1x4x256xf32>,
    return
  }
  func.func @transform_0(%arg0: i32) -> (i32, i32, i32) {
    %c0_i32 = arith.constant 0 : i32
    %c0_i32_0 = arith.constant 0 : i32
    %c0_i32_1 = arith.constant 0 : i32
    return %arg0, %c0_i32, %c0_i32_0 : i32, i32, i32
  }
  func.func @transform_1(%arg0: i32) -> (i32, i32, i32) {
    %c0_i32 = arith.constant 0 : i32
    %c0_i32_0 = arith.constant 0 : i32
    %c0_i32_1 = arith.constant 0 : i32
    %c0_i32_2 = arith.constant 0 : i32
    return %c0_i32, %c0_i32_0, %c0_i32_1 : i32, i32, i32
  }
  func.func @transform_2(%arg0: i32) -> (i32, i32) {
    %c0_i32 = arith.constant 0 : i32
    %c0_i32_0 = arith.constant 0 : i32
    %c0_i32_1 = arith.constant 0 : i32
    return %c0_i32, %c0_i32_0 : i32, i32
  }
  func.func @transform_3(%arg0: i32) -> (i32, i32, i32) {
    %c0_i32 = arith.constant 0 : i32
    %c0_i32_0 = arith.constant 0 : i32
    %c0_i32_1 = arith.constant 0 : i32
    return %arg0, %c0_i32, %c0_i32_0 : i32, i32, i32
  }
}

</mosaic_0001>

<llo_original>
// kernel: tpu_custom_call.1
$region0: #{tpu_custom_call.1}
  #allocation0 [shape = 'u32[]', space=smem, size = 0x4, offset = 0x4, fixed_abs, tag = 'smem constant byte address 0x4 - core index']
  #allocation1 [shape = 'u32[144,128]{1,0:T(1,128)}', space=vmem, size = 0x12000, scoped, tag = 'internal scratch']
  #allocation2 [shape = 'f32[1,1]{1,0:T(1,128)S(6)}', space=smem, size = 0x200, scoped, tag = 'scoped memory for tpu_custom_call.1']
  %s0 = inlined_call_operand.hbm [shape: f32[2,4,256], index: 0, kind: input, shape index: {}]
  %s1 = inlined_call_operand.vmem [shape: f32[1,4,1], index: 1, kind: input, shape index: {}]
  %s2 = inlined_call_operand.<no memory space> [shape: f32[1,1], index: 2, kind: input, shape index: {}]
  %s3 = inlined_call_operand.hbm [shape: f32[2,4,256], index: 3, kind: output, shape index: {}]
  %s4 = sld [smem:[#allocation0]]
  $region49: #{tpu_custom_call.1} parent=0
    _
  %s6 = ssub.s32 1, %s4
  %s7 = scalar_select 0, %s6, %s4
  %8 = sst [smem:[#allocation2]] %s2
  $region1: #{tpu_custom_call.1} parent=0
    #allocation3 [shape = 'u8[8192]{0}', space=vmem, size = 0x2000, scoped, tag = 'input window, operand 0']
    #allocation4 [shape = 's32[2]{0}', space=sflag, size = 0x8, scoped, tag = 'scoped memory for tpu_custom_call.1']
    #allocation5 [shape = 's32[2]{0}', space=sflag, size = 0x8, scoped, tag = 'scoped memory for tpu_custom_call.1']
    #allocation6 [shape = 'u8[8192]{0}', space=vmem, size = 0x2000, scoped, tag = 'output window, operand 0']
    %9 = vsyncpa [#allocation4], 0
    %s10 = scalar_lea.sflag [#allocation4], 1
    %11 = vsyncpa %s10, 0
    %12 = vsyncpa [#allocation5], 0
    %s13 = scalar_lea.sflag [#allocation5], 1
    %14 = vsyncpa %s13, 0
    loop: start=0, step=1, limit=4
    $region2: #{tpu_custom_call.1} parent=1 // loop_pre_header
      _
    $region3: #{tpu_custom_call.1} parent=1 // loop_header
      %s16 = sphi 0, %s20
      %p17 = scmp.ge.s32.totalorder %s16, 4
      %s26 = sphi 0, %s28
      %s29 = sphi 0, %s26
      %s30 = sphi 0, %s29
      %s46 = sphi 0, %s30
      %s50 = sphi 0, %s50
      %s52 = sphi 0, %s50
      %s53 = sphi 0, %s52
      %s67 = sphi 0, %s53
      %s71 = sphi 0, %s71
      %s73 = sphi 0, %s71
      %s74 = sphi 0, %s73
      %s88 = sphi 0, %s74
      %s94 = sphi 0, %s96
      %s97 = sphi 0, %s94
      %s98 = sphi 0, %s97
      %s114 = sphi 0, %s98
    $region4: #{tpu_custom_call.1} parent=1 // loop_header_branch
      %19 = sbr.rel (%p17) target = $region8
    $region5: #{tpu_custom_call.1} parent=1 // loop_body
      %s21 = ssub.s32 %s16, 1
      %s22 = ssub.s32 %s16, 2
      %s23 = sadd.s32 %s16, 1
      %s24 = ssub.s32 %s16, %s23
      %p25 = scmp.eq.s32.totalorder %s24, 0
      %s27 = sadd.s32 %s26, 1
      %s28 = scalar_select %p25, %s26, %s27
      %p31 = pneg %p25
      %p32 = scmp.eq.s32.totalorder %s16, 1
      %p33 = por %p31, %p32
      %p34 = scmp.ne.s32.totalorder %s26, %s29
      %p35 = scmp.eq.s32.totalorder %s16, 0
      %p36 = por %p34, %p35
      %p37 = scmp.ne.s32.totalorder %s26, %s29
      %p38 = scmp.eq.s32.totalorder %s21, 1
      %p39 = por %p37, %p38
      %p40 = scmp.ne.s32.totalorder %s29, %s30
      %p41 = scmp.eq.s32.totalorder %s21, 0
      %p42 = por %p40, %p41
      %p43 = scmp.ne.s32.totalorder %s29, %s30
      %p44 = scmp.eq.s32.totalorder %s22, 1
      %p45 = por %p43, %p44
      %p47 = scmp.ne.s32.totalorder %s30, %s46
      %p48 = scmp.eq.s32.totalorder %s22, 0
      %p49 = por %p47, %p48
      %s51 = sadd.s32 %s50, 1
      %p54 = scmp.eq.s32.totalorder %s16, 1
      %p55 = scmp.ne.s32.totalorder %s50, %s52
      %p56 = scmp.eq.s32.totalorder %s16, 0
      %p57 = por %p55, %p56
      %p58 = scmp.ne.s32.totalorder %s50, %s52
      %p59 = scmp.eq.s32.totalorder %s21, 1
      %p60 = por %p58, %p59
      %p61 = scmp.ne.s32.totalorder %s52, %s53
      %p62 = scmp.eq.s32.totalorder %s21, 0
      %p63 = por %p61, %p62
      %p64 = scmp.ne.s32.totalorder %s52, %s53
      %p65 = scmp.eq.s32.totalorder %s22, 1
      %p66 = por %p64, %p65
      %p68 = scmp.ne.s32.totalorder %s53, %s67
      %p69 = scmp.eq.s32.totalorder %s22, 0
      %p70 = por %p68, %p69
      %s72 = sadd.s32 %s71, 1
      %p75 = scmp.eq.s32.totalorder %s16, 1
      %p76 = scmp.ne.s32.totalorder %s71, %s73
      %p77 = scmp.eq.s32.totalorder %s16, 0
      %p78 = por %p76, %p77
      %p79 = scmp.ne.s32.totalorder %s71, %s73
      %p80 = scmp.eq.s32.totalorder %s21, 1
      %p81 = por %p79, %p80
      %p82 = scmp.ne.s32.totalorder %s73, %s74
      %p83 = scmp.eq.s32.totalorder %s21, 0
      %p84 = por %p82, %p83
      %p85 = scmp.ne.s32.totalorder %s73, %s74
      %p86 = scmp.eq.s32.totalorder %s22, 1
      %p87 = por %p85, %p86
      %p89 = scmp.ne.s32.totalorder %s74, %s88
      %p90 = scmp.eq.s32.totalorder %s22, 0
      %p91 = por %p89, %p90
      %s92 = ssub.s32 %s16, %s23
      %p93 = scmp.eq.s32.totalorder %s92, 0
      %s95 = sadd.s32 %s94, 1
      %s96 = scalar_select %p93, %s94, %s95
      %p99 = pneg %p93
      %p100 = scmp.eq.s32.totalorder %s16, 1
      %p101 = por %p99, %p100
      %p102 = scmp.ne.s32.totalorder %s94, %s97
      %p103 = scmp.eq.s32.totalorder %s16, 0
      %p104 = por %p102, %p103
      %p105 = scmp.ne.s32.totalorder %s94, %s97
      %p106 = scmp.eq.s32.totalorder %s21, 1
      %p107 = por %p105, %p106
      %p108 = scmp.ne.s32.totalorder %s97, %s98
      %p109 = scmp.eq.s32.totalorder %s21, 0
      %p110 = por %p108, %p109
      %p111 = scmp.ne.s32.totalorder %s97, %s98
      %p112 = scmp.eq.s32.totalorder %s22, 1
      %p113 = por %p111, %p112
      %p115 = scmp.ne.s32.totalorder %s98, %s114
      %p116 = scmp.eq.s32.totalorder %s22, 0
      %p117 = por %p115, %p116
      %p118 = scmp.le.s32.totalorder 1, %s16
      %p119 = scmp.lt.s32.totalorder %s16, 3
      %p120 = pnand %p118, %p119
      %p121 = pneg %p120
      // Predicated region
      $region9: #{tpu_custom_call.1} parent=5 // pred_check
        _
      $region10: #{tpu_custom_call.1} parent=5 // pred_check_branch
        %123 = sbr.rel (%p120) target = $region12
      $region11: #{tpu_custom_call.1} parent=5 // pred_region
        %s124 = ssub.s32 %s16, 1
        // Predicated region
        $region13: #{tpu_custom_call.1} parent=11 // pred_check
          %p125 = pneg %p63
        $region14: #{tpu_custom_call.1} parent=11 // pred_check_branch
          %127 = sbr.rel (%p125) target = $region16
        $region15: #{tpu_custom_call.1} parent=11 // pred_region
          _
        $region16: #{tpu_custom_call.1} parent=11 // pred_fallthru
          _
        // Predicated region
        $region17: #{tpu_custom_call.1} parent=11 // pred_check
          %p128 = pneg %p84
        $region18: #{tpu_custom_call.1} parent=11 // pred_check_branch
          %130 = sbr.rel (%p128) target = $region20
        $region19: #{tpu_custom_call.1} parent=11 // pred_region
          _
        $region20: #{tpu_custom_call.1} parent=11 // pred_fallthru
          _
      $region12: #{tpu_custom_call.1} parent=5 // pred_fallthru
        _
      %p131 = scmp.lt.s32.totalorder %s16, 2
      // Predicated region
      $region21: #{tpu_custom_call.1} parent=5 // pred_check
        %p132 = pneg %p131
      $region22: #{tpu_custom_call.1} parent=5 // pred_check_branch
        %134 = sbr.rel (%p132) target = $region24
      $region23: #{tpu_custom_call.1} parent=5 // pred_region
        // Predicated region
        $region25: #{tpu_custom_call.1} parent=23 // pred_check
          %p135 = pneg %p36
        $region26: #{tpu_custom_call.1} parent=23 // pred_check_branch
          %137 = sbr.rel (%p135) target = $region28
        $region27: #{tpu_custom_call.1} parent=23 // pred_region
          %s138 = sand.u32 %s26, 1
          %s139 = scalar_lea.sflag [#allocation4], %s138
          %s140 = sand.u32 %s26, 1
          %s141 = smul.addr %s140, 8
          %s142 = scalar_lea.vmem [#allocation3], %s141
          %s144 = ssub.s32 128, 128
          %145 = vsyncadd %s139, %s144
          %s146 = smul.addr %s16, 2
          %s147 = smul.addr %s146, 64
          %s148 = scalar_lea.hbm %s0, %s147
          %s150 = sshll.u32 %s142, 4
          %s151 = int_to_ptr.vmem [resolvable:$true] %s150
          %153 = dma.hbm_to_vmem [thread:$0]  %s148, 128, %s151, %s139
        $region28: #{tpu_custom_call.1} parent=23 // pred_fallthru
          _
      $region24: #{tpu_custom_call.1} parent=5 // pred_fallthru
        _
      %p154 = scmp.le.s32.totalorder 1, %s16
      %p155 = scmp.lt.s32.totalorder %s16, 3
      %p156 = pnand %p154, %p155
      %p157 = pneg %p156
      // Predicated region
      $region29: #{tpu_custom_call.1} parent=5 // pred_check
        _
      $region30: #{tpu_custom_call.1} parent=5 // pred_check_branch
        %159 = sbr.rel (%p156) target = $region32
      $region31: #{tpu_custom_call.1} parent=5 // pred_region
        %s160 = ssub.s32 %s16, 1
        %s161 = sand.u32 %s29, 1
        %s162 = scalar_lea.sflag [#allocation4], %s161
        %s163 = sand.u32 %s29, 1
        %s164 = smul.addr %s163, 8
        %s165 = scalar_lea.vmem [#allocation3], %s164
        // Predicated region
        $region33: #{tpu_custom_call.1} parent=31 // pred_check
          %p166 = pneg %p42
        $region34: #{tpu_custom_call.1} parent=31 // pred_check_branch
          %168 = sbr.rel (%p166) target = $region36
        $region35: #{tpu_custom_call.1} parent=31 // pred_region
          %169 = dma.done %s162, 128
        $region36: #{tpu_custom_call.1} parent=31 // pred_fallthru
          _
        %s170 = sand.u32 %s29, 1
        %s171 = scalar_lea.sflag [#allocation4], %s170
        %s172 = sand.u32 %s29, 1
        %s173 = smul.addr %s172, 8
        %s174 = scalar_lea.vmem [#allocation3], %s173
        %p175 = pneg %p42
        %p176 = pneg %p39
        %p177 = pneg %p63
        %p178 = pneg %p60
        %p179 = pneg %p84
        %p180 = pneg %p81
        %p181 = pneg %p110
        %p182 = pneg %p107
        %s183 = sand.u32 %s97, 1
        %s184 = scalar_lea.sflag [#allocation5], %s183
        %s185 = sand.u32 %s97, 1
        %s186 = smul.addr %s185, 8
        %s187 = scalar_lea.vmem [#allocation6], %s186
        %v188 = vld [vmem:[%s165] sm:$0xff]
        %v190 = vcombine.high %v188, %v188
        %vm192 = vcmask 1043456
        %v193 = vsel %vm192, %v188, 0.0
        %v194 = vsel %vm192, %v190, 0.0
        %v195 = vadd.f32 %v193, %v194
        %196 = vadd.xlane.f32.xlu0 %v195
        %v197 = vpop.xlane.xlu0 %196
        %v198 = vld [vmem:[%s1] sm:$0xf]
        %v199 = vmul.f32 %v197, %v198
        %vm200 = vcmask 3072
        %v201 = vsel %vm200, %v199, 0.0
        %202 = vadd.xlane.f32.xlu0 %v201
        %v203 = vpop.xlane.xlu0 %202
        %v204 = vrot.slane %v203, 4
        %v205 = vadd.f32 %v203, %v204
        %v206 = vrot.slane %v205, 2
        %v207 = vadd.f32 %v205, %v206
        %v208 = vrot.slane %v207, 1
        %v209 = vadd.f32 %v207, %v208
        %s210 = vtos %v209
        %s211 = sld [smem:[#allocation2]]
        %s212 = sadd.f32 %s210, %s211
        %s213 = smax.f32 %s212, 0.0
        %v214 = vstv %s213
        %v215 = vmul.f32 %v188, %v214
        %216 = vst [vmem:[%s187] sm:$0xff] %v215
        %s217 = sand.u32 %s97, 1
        %s218 = scalar_lea.sflag [#allocation5], %s217
        %s219 = sand.u32 %s97, 1
        %s220 = smul.addr %s219, 8
        %s221 = scalar_lea.vmem [#allocation6], %s220
        // Predicated region
        $region37: #{tpu_custom_call.1} parent=31 // pred_check
          %p222 = pneg %p107
        $region38: #{tpu_custom_call.1} parent=31 // pred_check_branch
          %224 = sbr.rel (%p222) target = $region40
        $region39: #{tpu_custom_call.1} parent=31 // pred_region
          %s226 = ssub.s32 128, 128
          %227 = vsyncadd %s218, %s226
          %s228 = smul.addr %s21, 2
          %s229 = smul.addr %s228, 64
          %s230 = scalar_lea.hbm %s3, %s229
          %s232 = sshll.u32 %s221, 4
          %s233 = int_to_ptr.vmem [resolvable:$true] %s232
          %235 = dma.vmem_to_hbm [thread:$0]  %s233, 128, %s230, %s218
        $region40: #{tpu_custom_call.1} parent=31 // pred_fallthru
          _
      $region32: #{tpu_custom_call.1} parent=5 // pred_fallthru
        _
      %p236 = scmp.le.s32.totalorder 2, %s16
      // Predicated region
      $region41: #{tpu_custom_call.1} parent=5 // pred_check
        %p237 = pneg %p236
      $region42: #{tpu_custom_call.1} parent=5 // pred_check_branch
        %239 = sbr.rel (%p237) target = $region44
      $region43: #{tpu_custom_call.1} parent=5 // pred_region
        %s240 = ssub.s32 %s16, 2
        // Predicated region
        $region45: #{tpu_custom_call.1} parent=43 // pred_check
          %p241 = pneg %p113
        $region46: #{tpu_custom_call.1} parent=43 // pred_check_branch
          %243 = sbr.rel (%p241) target = $region48
        $region47: #{tpu_custom_call.1} parent=43 // pred_region
          %s244 = sand.u32 %s98, 1
          %s245 = scalar_lea.sflag [#allocation5], %s244
          %s246 = sand.u32 %s98, 1
          %s247 = smul.addr %s246, 8
          %s248 = scalar_lea.vmem [#allocation6], %s247
          %249 = dma.done %s245, 128
        $region48: #{tpu_custom_call.1} parent=43 // pred_fallthru
          _
      $region44: #{tpu_custom_call.1} parent=5 // pred_fallthru
        _
    $region6: #{tpu_custom_call.1} parent=1 // loop_footer
      %s20 = sadd.s32 1, %s16
    $region7: #{tpu_custom_call.1} parent=1 // loop_footer_branch
      %15 = sbr.rel target = $region3
    $region8: #{tpu_custom_call.1} parent=1 // loop_exit
      _
    %250 = vsyncpa [#allocation4], 1
    %s251 = scalar_lea.sflag [#allocation4], 1
    %252 = vsyncpa %s251, 1
    %253 = vsyncpa [#allocation5], 1
    %s254 = scalar_lea.sflag [#allocation5], 1
    %255 = vsyncpa %s254, 1

</llo_original>
